<compile_context>
chip_gen: v6e
topology: v6e:2x2x1
jax: 0.10.0
libtpu: 0.0.40
codegen_flags: <defaults>
</compile_context>

<pallas_src>
import functools

import jax
import jax.numpy as jnp
from jax.experimental import pallas as pl
from jax.experimental.pallas import tpu as pltpu


def _round_up(x, m):
    return ((x + m - 1) // m) * m


def _vq_kernel(x_ref, w_ref, wt_ref, bias_ref,
               q_ref, idx_ref, sqe_ref, cnt_ref, *, t_valid):
    """Quantizes one (batch, time-tile) slab, entirely in (D, T) layout.

    x_ref:    (1, D, TT)     input slab, native NCT layout (lanes = time)
    w_ref:    (K, D)         codebook (grid-resident)
    wt_ref:   (D, K)         transposed codebook (grid-resident)
    bias_ref: (K, 1)         -0.5 * ||w_k||^2 (hoisted, grid-resident)
    q_ref:    (1, D, TT)     quantized slab, same layout, input dtype
    idx_ref:  (1, 1, 1, TT)  int32 code index per time step
    sqe_ref:  (1, 1, 1, TT)  sum over D of (q - x)^2 per time step (masked)
    cnt_ref:  (1, 1, K, 1)   per-code selection counts for this tile (masked)
    """
    t_idx = pl.program_id(1)
    tile_t = x_ref.shape[2]
    K = w_ref.shape[0]

    x = x_ref[0].astype(jnp.float32)              # (D, TT)  -- no transpose
    w = w_ref[...].astype(jnp.float32)            # (K, D)
    wt = wt_ref[...].astype(jnp.float32)          # (D, K)
    bias = bias_ref[...].astype(jnp.float32)      # (K, 1)

    # argmin_k ||x_t - w_k||^2  ==  argmax_k ( w_k . x_t - 0.5 ||w_k||^2 )
    score = jnp.dot(w, x, preferred_element_type=jnp.float32) + bias   # (K, TT)

    k_iota = jax.lax.broadcasted_iota(jnp.int32, score.shape, 0)       # (K, TT)
    max_s = jnp.max(score, axis=0, keepdims=True)                      # (1, TT)
    idx = jnp.min(jnp.where(score == max_s, k_iota, K),                # first max
                  axis=0, keepdims=True)                               # (1, TT)
    onehot = (k_iota == idx).astype(jnp.float32)                       # (K, TT)

    # Codebook gather straight into (D, TT): q[:, t] = weight[idx_t, :]
    q = jnp.dot(wt, onehot, preferred_element_type=jnp.float32)        # (D, TT)

    q_ref[0] = q.astype(q_ref.dtype)
    idx_ref[...] = idx.reshape(idx_ref.shape)

    # Lane mask over time positions beyond the true sequence length (last tile).
    t_glob = t_idx * tile_t + jax.lax.broadcasted_iota(jnp.int32, (1, tile_t), 1)
    valid = t_glob < t_valid                                           # (1, TT)

    diff = q - x
    sqe = jnp.sum(diff * diff, axis=0, keepdims=True)                  # (1, TT)
    sqe_ref[...] = jnp.where(valid, sqe, 0.0).reshape(sqe_ref.shape)

    cnt = jnp.sum(jnp.where(valid, onehot, 0.0), axis=1, keepdims=True)  # (K, 1)
    cnt_ref[...] = cnt.reshape(cnt_ref.shape)


def _pick_config(B, D, T, K, x_itemsize):
    """Generation-aware time-tile width and VMEM limit."""
    try:
        vmem_phys = int(pltpu.get_tpu_info().vmem_capacity_bytes)
    except Exception:
        vmem_phys = 64 * 1024 * 1024          # conservative fallback (v7x-safe)
    small_vmem = vmem_phys < 100 * 1024 * 1024
    vmem_limit = (48 if small_vmem else 100) * 1024 * 1024
    target = 256 if small_vmem else 512

    # B == 1: keep >= 2 time tiles so a 2-TensorCore chip (v7x) can shard the
    # all-"parallel" grid across both cores (neutral on 1-TC chips).
    if B == 1 and T > 128:
        target = min(target, _round_up(-(-T // 2), 128))

    tile = max(128, min(_round_up(max(T, 1), 128), _round_up(target, 128)))

    def footprint(tt):
        io = 2 * (D * tt * x_itemsize) * 2            # x in + q out, dbl-buffered
        io += 2 * 2 * (tt * 4) + 2 * (K * 4)          # idx, sqe, counts blocks
        codebook = 2 * 2 * (K * D * 4) + 2 * K * 4    # w, w^T, bias (dbl-buffered)
        temps = 5 * K * tt * 4 + 3 * D * tt * 4       # score/onehot/iota + f32 x,q,diff
        return io + codebook + temps

    while tile > 128 and footprint(tile) > vmem_limit // 2:
        tile -= 128
    return tile, vmem_limit


def _vq_pallas(x, w, wt, bias, *, tile_t, vmem_limit):
    B, D, T = x.shape
    K = w.shape[0]
    nT = -(-T // tile_t)
    grid = (B, nT)

    kernel = functools.partial(_vq_kernel, t_valid=T)

    out_shapes = (
        jax.ShapeDtypeStruct((B, D, T), x.dtype),               # quantized (NCT)
        jax.ShapeDtypeStruct((B, nT, 1, tile_t), jnp.int32),    # code indices
        jax.ShapeDtypeStruct((B, nT, 1, tile_t), jnp.float32),  # per-t sq. error
        jax.ShapeDtypeStruct((B, nT, K, 1), jnp.float32),       # per-code counts
    )
    in_specs = [
        pl.BlockSpec((1, D, tile_t), lambda b, t: (b, 0, t)),
        pl.BlockSpec((K, D), lambda b, t: (0, 0)),
        pl.BlockSpec((D, K), lambda b, t: (0, 0)),
        pl.BlockSpec((K, 1), lambda b, t: (0, 0)),
    ]
    out_specs = (
        pl.BlockSpec((1, D, tile_t), lambda b, t: (b, 0, t)),
        pl.BlockSpec((1, 1, 1, tile_t), lambda b, t: (b, t, 0, 0)),
        pl.BlockSpec((1, 1, 1, tile_t), lambda b, t: (b, t, 0, 0)),
        pl.BlockSpec((1, 1, K, 1), lambda b, t: (b, t, 0, 0)),
    )
    return pl.pallas_call(
        kernel,
        out_shape=out_shapes,
        grid_spec=pltpu.PrefetchScalarGridSpec(
            num_scalar_prefetch=0,
            grid=grid,
            in_specs=in_specs,
            out_specs=out_specs,
        ),
        compiler_params=pltpu.CompilerParams(
            # No carried accumulators -> both grid axes independent.
            dimension_semantics=("parallel", "parallel"),
            vmem_limit_bytes=int(vmem_limit),
        ),
    )(x, w, wt, bias)


@functools.partial(
    jax.jit,
    static_argnames=("commitment_cost", "tile_t", "vmem_limit", "return_encodings"))
def _vq_forward(inputs_bct, weight, *, commitment_cost, tile_t, vmem_limit,
                return_encodings):
    B, D, T = inputs_bct.shape
    K = weight.shape[0]

    w = weight.astype(jnp.float32)                       # codebook in f32
    wt = w.T                                             # tiny one-time transpose
    bias = -0.5 * jnp.sum(w * w, axis=1, keepdims=True)  # (K, 1), hoisted

    q, idx_p, sqe_p, cnt_p = _vq_pallas(
        inputs_bct, w, wt, bias, tile_t=tile_t, vmem_limit=vmem_limit)

    N = B * T
    nT = idx_p.shape[1]

    # quantized is already (B, D, T) in the input dtype/layout: no slicing pass.
    # Only the tiny per-tile index slab is trimmed of tile padding here.
    indices = idx_p.reshape(B, nT * tile_t)[:, :T].reshape(N)

    # Losses: detach() does not change forward values, so
    # e_latent_loss == q_latent_loss == mse(quantized, inputs).
    sse = jnp.sum(sqe_p)                                 # already masked in-kernel
    mse = sse / (N * D)
    loss = (1.0 + commitment_cost) * mse

    counts = jnp.sum(cnt_p, axis=(0, 1))[:, 0]           # (K,)
    avg_probs = counts / N
    perplexity = jnp.exp(-jnp.sum(avg_probs * jnp.log(avg_probs + 1e-10)))

    if return_encodings:
        encodings = jax.nn.one_hot(indices, K, dtype=jnp.float32)   # (N, K)
    else:
        encodings = indices          # cheaper for production callers

    return loss, q, perplexity, encodings


def vector_quantizer_forward(inputs_bct, weight, commitment_cost=0.25,
                             return_encodings=True):
    """Mirrors VectorQuantizer.forward.

    inputs_bct: (B, D, T)  -- NCT layout, exactly what the PyTorch module gets.
    weight:     (K, D)     -- codebook (nn.Embedding.weight).
    Returns (loss, quantized_bct, perplexity, encodings) like the PyTorch module.
    """
    B, D, T = inputs_bct.shape
    K = weight.shape[0]
    tile_t, vmem_limit = _pick_config(
        B, D, T, K, jnp.dtype(inputs_bct.dtype).itemsize)
    return _vq_forward(inputs_bct, weight,
                       commitment_cost=float(commitment_cost),
                       tile_t=tile_t, vmem_limit=vmem_limit,
                       return_encodings=return_encodings)


if __name__ == "__main__":
    # Module hyperparameters (small, deterministic)
    num_embeddings = 64     # K
    embedding_dim = 32      # D
    commitment_cost = 0.25
    batch, time = 2, 8      # input is (B, D, T) = (2, 32, 8)

    key = jax.random.PRNGKey(0)
    k_w, k_x = jax.random.split(key)

    # nn.Embedding weight init: uniform(-1/K, 1/K)
    weight = jax.random.uniform(
        k_w, (num_embeddings, embedding_dim),
        minval=-1.0 / num_embeddings, maxval=1.0 / num_embeddings,
        dtype=jnp.float32)

    x = jax.random.normal(k_x, (batch, embedding_dim, time), dtype=jnp.float32)

    loss, quantized, perplexity, encodings = vector_quantizer_forward(
        x, weight, commitment_cost=commitment_cost)
    jax.block_until_ready((loss, quantized, perplexity, encodings))

    # Lightweight pure-JAX reference check (exact PyTorch formula)
    x_btd = jnp.transpose(x, (0, 2, 1))
    flat = x_btd.reshape(-1, embedding_dim)
    dist = (jnp.sum(flat ** 2, axis=1, keepdims=True)
            + jnp.sum(weight ** 2, axis=1)
            - 2.0 * flat @ weight.T)
    idx_ref = jnp.argmin(dist, axis=1)
    enc_ref = jax.nn.one_hot(idx_ref, num_embeddings, dtype=jnp.float32)
    q_ref = enc_ref @ weight
    mse_ref = jnp.mean((q_ref - flat) ** 2)
    loss_ref = (1.0 + commitment_cost) * mse_ref
    avg_p = jnp.mean(enc_ref, axis=0)
    perp_ref = jnp.exp(-jnp.sum(avg_p * jnp.log(avg_p + 1e-10)))
    q_ref_bct = jnp.transpose(q_ref.reshape(batch, time, embedding_dim), (0, 2, 1))

    assert jnp.allclose(loss, loss_ref, atol=1e-5), (loss, loss_ref)
    assert jnp.allclose(quantized, q_ref_bct, atol=1e-5)
    assert jnp.allclose(perplexity, perp_ref, atol=1e-4)
    assert jnp.allclose(encodings, enc_ref)
    assert quantized.shape == x.shape and quantized.dtype == x.dtype
    assert encodings.shape == (batch * time, num_embeddings)

    print("KERNEL_OK")
</pallas_src>

<mosaic_0001>
module attributes {stable_mosaic.version = 11 : i64} {
  func.func @_vq_kernel(%arg0: i32, %arg1: i32, %arg2: memref<1x32x128xf32, #tpu.memory_space<vmem>>, %arg3: memref<64x32xf32, #tpu.memory_space<vmem>>, %arg4: memref<32x64xf32, #tpu.memory_space<vmem>>, %arg5: memref<64x1xf32, #tpu.memory_space<vmem>>, %arg6: memref<1x32x128xf32, #tpu.memory_space<vmem>>, %arg7: memref<1x1x1x128xi32, #tpu.memory_space<vmem>>, %arg8: memref<1x1x1x128xf32, #tpu.memory_space<vmem>>, %arg9: memref<1x1x64x1xf32, #tpu.memory_space<vmem>>) attributes {dimension_semantics = [#tpu.dimension_semantics<parallel>, #tpu.dimension_semantics<parallel>], iteration_bounds = array<i64: 2, 1>, scalar_prefetch = 0 : i64, scratch_operands = 0 : i64, tpu.core_type = #tpu.core_type<tc>, window_params = [{transform_indices = @transform_0, window_bounds = array<i64: 1, 32, 128>}, {pipeline_mode = #tpu.pipeline_mode<synchronous>, transform_indices = @transform_1, window_bounds = array<i64: 64, 32>}, {pipeline_mode = #tpu.pipeline_mode<synchronous>, transform_indices = @transform_2, window_bounds = array<i64: 32, 64>}, {pipeline_mode = #tpu.pipeline_mode<synchronous>, transform_indices = @transform_3, window_bounds = array<i64: 64, 1>}, {transform_indices = @transform_4, window_bounds = array<i64: 1, 32, 128>}, {transform_indices = @transform_5, window_bounds = array<i64: 1, 1, 1, 128>}, {transform_indices = @transform_6, window_bounds = array<i64: 1, 1, 1, 128>}, {transform_indices = @transform_7, window_bounds = array<i64: 1, 1, 64, 1>}]} {
    %c0 = arith.constant 0 : index
    %c0_0 = arith.constant 0 : index
    %c0_1 = arith.constant 0 : index
    %0 = vector.load %arg2[%c0, %c0_0, %c0_1] : memref<1x32x128xf32, #tpu.memory_space<vmem>>, vector<1x32x128xf32>
    %1 = vector.shape_cast %0 : vector<1x32x128xf32> to vector<32x128xf32>
    %c0_2 = arith.constant 0 : index
    %c0_3 = arith.constant 0 : index
    %2 = vector.load %arg3[%c0_2, %c0_3] : memref<64x32xf32, #tpu.memory_space<vmem>>, vector<64x32xf32>
    %c0_4 = arith.constant 0 : index
    %c0_5 = arith.constant 0 : index
    %3 = vector.load %arg4[%c0_4, %c0_5] : memref<32x64xf32, #tpu.memory_space<vmem>>, vector<32x64xf32>
    %c0_6 = arith.constant 0 : index
    %c0_7 = arith.constant 0 : index
    %4 = vector.load %arg5[%c0_6, %c0_7] : memref<64x1xf32, #tpu.memory_space<vmem>>, vector<64x1xf32>
    %cst = arith.constant dense<0.000000e+00> : vector<64x128xf32>
    %5 = tpu.matmul %2, %1, %cst {dimension_numbers = #tpu.dot_dimension_numbers<[1], [0], [0], [1], [0, 0, 1, 1], [], []>} : vector<64x32xf32>, vector<32x128xf32>, vector<64x128xf32> -> vector<64x128xf32>
    %6 = vector.broadcast %4 : vector<64x1xf32> to vector<64x128xf32>
    %7 = arith.addf %5, %6 : vector<64x128xf32>
    %8 = tpu.iota {dimensions = array<i32: 0>} : vector<64x128xi32>
    %cst_8 = arith.constant dense<0xFF800000> : vector<128xf32>
    %9 = vector.multi_reduction <maximumf>, %7, %cst_8 [0] : vector<64x128xf32> to vector<128xf32>
    %10 = vector.shape_cast %9 : vector<128xf32> to vector<1x128xf32>
    %11 = vector.broadcast %10 : vector<1x128xf32> to vector<64x128xf32>
    %12 = arith.cmpf oeq, %7, %11 : vector<64x128xf32>
    %c64_i32 = arith.constant 64 : i32
    %13 = vector.broadcast %c64_i32 : i32 to vector<64x128xi32>
    %14 = arith.select %12, %8, %13 : vector<64x128xi1>, vector<64x128xi32>
    %cst_9 = arith.constant dense<2147483647> : vector<128xi32>
    %15 = vector.multi_reduction <minsi>, %14, %cst_9 [0] : vector<64x128xi32> to vector<128xi32>
    %16 = vector.shape_cast %15 : vector<128xi32> to vector<1x128xi32>
    %17 = vector.broadcast %16 : vector<1x128xi32> to vector<64x128xi32>
    %18 = arith.cmpi eq, %8, %17 : vector<64x128xi32>
    %19 = arith.extui %18 : vector<64x128xi1> to vector<64x128xi32>
    %20 = arith.sitofp %19 : vector<64x128xi32> to vector<64x128xf32>
    %cst_10 = arith.constant dense<0.000000e+00> : vector<32x128xf32>
    %21 = tpu.matmul %3, %20, %cst_10 {dimension_numbers = #tpu.dot_dimension_numbers<[1], [0], [0], [1], [0, 0, 1, 1], [], []>} : vector<32x64xf32>, vector<64x128xf32>, vector<32x128xf32> -> vector<32x128xf32>
    %c0_11 = arith.constant 0 : index
    %c0_12 = arith.constant 0 : index
    %c0_13 = arith.constant 0 : index
    %22 = vector.load %arg6[%c0_11, %c0_12, %c0_13] : memref<1x32x128xf32, #tpu.memory_space<vmem>>, vector<1x32x128xf32>
    %23 = vector.shape_cast %22 : vector<1x32x128xf32> to vector<32x128xf32>
    %24 = vector.shape_cast %21 : vector<32x128xf32> to vector<1x32x128xf32>
    tpu.vector_store %arg6[%c0_11, %c0_12, %c0_13], %24 {strides = array<i32>} : memref<1x32x128xf32, #tpu.memory_space<vmem>>, vector<1x32x128xf32>,
    %25 = vector.shape_cast %16 : vector<1x128xi32> to vector<1x1x1x128xi32>
    %c0_14 = arith.constant 0 : index
    %c0_15 = arith.constant 0 : index
    %c0_16 = arith.constant 0 : index
    %c0_17 = arith.constant 0 : index
    %26 = vector.load %arg7[%c0_14, %c0_15, %c0_16, %c0_17] : memref<1x1x1x128xi32, #tpu.memory_space<vmem>>, vector<1x1x1x128xi32>
    tpu.vector_store %arg7[%c0_14, %c0_15, %c0_16, %c0_17], %25 {strides = array<i32>} : memref<1x1x1x128xi32, #tpu.memory_space<vmem>>, vector<1x1x1x128xi32>,
    %c128_i32 = arith.constant 128 : i32
    %27 = arith.muli %arg1, %c128_i32 : i32
    %28 = tpu.iota {dimensions = array<i32: 1>} : vector<1x128xi32>
    %29 = vector.broadcast %27 : i32 to vector<1x128xi32>
    %30 = arith.addi %29, %28 : vector<1x128xi32>
    %c8_i32 = arith.constant 8 : i32
    %31 = vector.broadcast %c8_i32 : i32 to vector<1x128xi32>
    %32 = arith.cmpi slt, %30, %31 : vector<1x128xi32>
    %33 = arith.subf %21, %1 : vector<32x128xf32>
    %34 = arith.mulf %33, %33 : vector<32x128xf32>
    %cst_18 = arith.constant dense<0.000000e+00> : vector<128xf32>
    %35 = vector.multi_reduction <add>, %34, %cst_18 [0] : vector<32x128xf32> to vector<128xf32>
    %36 = vector.shape_cast %35 : vector<128xf32> to vector<1x128xf32>
    %cst_19 = arith.constant 0.000000e+00 : f32
    %37 = vector.broadcast %cst_19 : f32 to vector<1x128xf32>
    %38 = arith.select %32, %36, %37 : vector<1x128xi1>, vector<1x128xf32>
    %39 = vector.shape_cast %38 : vector<1x128xf32> to vector<1x1x1x128xf32>
    %c0_20 = arith.constant 0 : index
    %c0_21 = arith.constant 0 : index
    %c0_22 = arith.constant 0 : index
    %c0_23 = arith.constant 0 : index
    %40 = vector.load %arg8[%c0_20, %c0_21, %c0_22, %c0_23] : memref<1x1x1x128xf32, #tpu.memory_space<vmem>>, vector<1x1x1x128xf32>
    tpu.vector_store %arg8[%c0_20, %c0_21, %c0_22, %c0_23], %39 {strides = array<i32>} : memref<1x1x1x128xf32, #tpu.memory_space<vmem>>, vector<1x1x1x128xf32>,
    %cst_24 = arith.constant 0.000000e+00 : f32
    %41 = vector.shape_cast %32 : vector<1x128xi1> to vector<1x128xi1>
    %42 = vector.broadcast %41 : vector<1x128xi1> to vector<64x128xi1>
    %43 = vector.broadcast %cst_24 : f32 to vector<64x128xf32>
    %44 = arith.select %42, %20, %43 : vector<64x128xi1>, vector<64x128xf32>
    %cst_25 = arith.constant dense<0.000000e+00> : vector<64xf32>
    %45 = vector.multi_reduction <add>, %44, %cst_25 [1] : vector<64x128xf32> to vector<64xf32>
    %46 = vector.shape_cast %45 : vector<64xf32> to vector<64x1xf32>
    %47 = vector.shape_cast %46 : vector<64x1xf32> to vector<1x1x64x1xf32>
    %c0_26 = arith.constant 0 : index
    %c0_27 = arith.constant 0 : index
    %c0_28 = arith.constant 0 : index
    %c0_29 = arith.constant 0 : index
    %48 = vector.load %arg9[%c0_26, %c0_27, %c0_28, %c0_29] : memref<1x1x64x1xf32, #tpu.memory_space<vmem>>, vector<1x1x64x1xf32>
    tpu.vector_store %arg9[%c0_26, %c0_27, %c0_28, %c0_29], %47 {strides = array<i32>} : memref<1x1x64x1xf32, #tpu.memory_space<vmem>>, vector<1x1x64x1xf32>,
    return
  }
  func.func @transform_0(%arg0: i32, %arg1: i32) -> (i32, i32, i32) {
    %c0_i32 = arith.constant 0 : i32
    %c0_i32_0 = arith.constant 0 : i32
    return %arg0, %c0_i32, %arg1 : i32, i32, i32
  }
  func.func @transform_1(%arg0: i32, %arg1: i32) -> (i32, i32) {
    %c0_i32 = arith.constant 0 : i32
    %c0_i32_0 = arith.constant 0 : i32
    %c0_i32_1 = arith.constant 0 : i32
    return %c0_i32, %c0_i32_0 : i32, i32
  }
  func.func @transform_2(%arg0: i32, %arg1: i32) -> (i32, i32) {
    %c0_i32 = arith.constant 0 : i32
    %c0_i32_0 = arith.constant 0 : i32
    %c0_i32_1 = arith.constant 0 : i32
    return %c0_i32, %c0_i32_0 : i32, i32
  }
  func.func @transform_3(%arg0: i32, %arg1: i32) -> (i32, i32) {
    %c0_i32 = arith.constant 0 : i32
    %c0_i32_0 = arith.constant 0 : i32
    %c0_i32_1 = arith.constant 0 : i32
    return %c0_i32, %c0_i32_0 : i32, i32
  }
  func.func @transform_4(%arg0: i32, %arg1: i32) -> (i32, i32, i32) {
    %c0_i32 = arith.constant 0 : i32
    %c0_i32_0 = arith.constant 0 : i32
    return %arg0, %c0_i32, %arg1 : i32, i32, i32
  }
  func.func @transform_5(%arg0: i32, %arg1: i32) -> (i32, i32, i32, i32) {
    %c0_i32 = arith.constant 0 : i32
    %c0_i32_0 = arith.constant 0 : i32
    %c0_i32_1 = arith.constant 0 : i32
    return %arg0, %arg1, %c0_i32, %c0_i32_0 : i32, i32, i32, i32
  }
  func.func @transform_6(%arg0: i32, %arg1: i32) -> (i32, i32, i32, i32) {
    %c0_i32 = arith.constant 0 : i32
    %c0_i32_0 = arith.constant 0 : i32
    %c0_i32_1 = arith.constant 0 : i32
    return %arg0, %arg1, %c0_i32, %c0_i32_0 : i32, i32, i32, i32
  }
  func.func @transform_7(%arg0: i32, %arg1: i32) -> (i32, i32, i32, i32) {
    %c0_i32 = arith.constant 0 : i32
    %c0_i32_0 = arith.constant 0 : i32
    %c0_i32_1 = arith.constant 0 : i32
    return %arg0, %arg1, %c0_i32, %c0_i32_0 : i32, i32, i32, i32
  }
}

</mosaic_0001>

<llo_original>
// kernel: eq.1
$region0: #{eq.1}
  %s0 = inlined_call_operand.vmem [shape: s32[2,8], index: 0, kind: input, shape index: {}]
  %s1 = inlined_call_operand.vmem [shape: s32[16], index: 1, kind: output, shape index: {}]
  $region1: #{eq.1} parent=0
    #allocation0 [shape = 'u8[4096]{0}', space=vmem, size = 0x1000, scoped, tag = 'scoped mem for output reshape']
    #allocation1 [shape = 'u8[4096]{0}', space=vmem, size = 0x1000, scoped, tag = 'scoped mem for input reshape']
    %s3 = sshll.u32 1, 2
    %s4 = ssub.s32 %s3, 1
    %v5 = vld [vmem:[%s0] sm:%s4]
    %6 = vst [vmem:[#allocation1] sm:%s4] %v5
    %v7 = vld [vmem:[#allocation1] sm:$0x1]
    %vm8 = vcmask 64512
    %9 = vst.msk [vmem:[#allocation0] sm:$0x1] %vm8, %v7
    %s10 = scalar_lea.vmem [#allocation1], 1
    %v11 = vld [vmem:[%s10] sm:$0x1]
    %12 = vrot.lane.b32.xlu0 %v11, 8
    %v13 = vpop.permute.xlu0 %12
    %vm14 = vcmask 130112
    %15 = vst.msk [vmem:[#allocation0] sm:$0x1] %vm14, %v13
    %s17 = sshll.u32 1, 1
    %s18 = ssub.s32 %s17, 1
    %v20 = vld [vmem:[#allocation0] sm:%s18]
    %s21 = sshll.u32 1, 1
    %s22 = ssub.s32 %s21, 1
    %23 = vst [vmem:[%s1] sm:%s22] %v20

// kernel: _vq_forward.1
$region0: #{_vq_forward.1}
  #allocation0 [shape = 'u32[]', space=smem, size = 0x4, offset = 0x4, fixed_abs, tag = 'smem constant byte address 0x4 - core index']
  #allocation1 [shape = 'u32[144,128]{1,0:T(1,128)}', space=vmem, size = 0x12000, scoped, tag = 'internal scratch']
  %s0 = inlined_call_operand.vmem [shape: f32[2,32,8], index: 0, kind: input, shape index: {}]
  %s1 = inlined_call_operand.vmem [shape: f32[64,32], index: 1, kind: input, shape index: {}]
  %s2 = inlined_call_operand.vmem [shape: f32[32,64], index: 2, kind: input, shape index: {}]
  %s3 = inlined_call_operand.vmem [shape: f32[64,1], index: 3, kind: input, shape index: {}]
  %s4 = inlined_call_operand.vmem [shape: f32[2,32,8], index: 4, kind: output, shape index: {0}]
  %s5 = inlined_call_operand.vmem [shape: s32[2,1,1,128], index: 5, kind: output, shape index: {1}]
  %s6 = inlined_call_operand.vmem [shape: f32[2,1,1,128], index: 6, kind: output, shape index: {2}]
  %s7 = inlined_call_operand.vmem [shape: f32[2,1,64,1], index: 7, kind: output, shape index: {3}]
  %8 = xla_tuple %s4, %s5, %s6, %s7
  %s9 = sld [smem:[#allocation0]]
  $region73: #{_vq_forward.1} parent=0
    _
  %s11 = ssub.s32 1, %s9
  %s12 = scalar_select 0, %s11, %s9
  loop: start=0, step=1, limit=4
  $region2: #{_vq_forward.1} parent=0 // loop_pre_header
    _
  $region3: #{_vq_forward.1} parent=0 // loop_header
    %s14 = sphi 0, %s18
    %p15 = scmp.ge.s32.totalorder %s14, 4
    %s21 = sphi 0, %s33
    %s22 = sphi 0, %s29
    %s23 = sphi 0, %s21
    %s24 = sphi 0, %s22
    %s25 = sphi 0, %s23
    %s26 = sphi 0, %s24
    %s38 = sphi 0, %s40
    %s41 = sphi 0, %s38
    %s42 = sphi 0, %s41
    %s58 = sphi 0, %s42
    %s62 = sphi 0, %s62
    %s64 = sphi 0, %s62
    %s65 = sphi 0, %s64
    %s79 = sphi 0, %s65
    %s83 = sphi 0, %s83
    %s85 = sphi 0, %s83
    %s86 = sphi 0, %s85
    %s100 = sphi 0, %s86
    %s104 = sphi 0, %s104
    %s106 = sphi 0, %s104
    %s107 = sphi 0, %s106
    %s121 = sphi 0, %s107
    %s129 = sphi 0, %s131
    %s132 = sphi 0, %s129
    %s133 = sphi 0, %s132
    %s149 = sphi 0, %s133
    %s157 = sphi 0, %s159
    %s160 = sphi 0, %s157
    %s161 = sphi 0, %s160
    %s177 = sphi 0, %s161
    %s185 = sphi 0, %s187
    %s188 = sphi 0, %s185
    %s189 = sphi 0, %s188
    %s205 = sphi 0, %s189
    %s213 = sphi 0, %s215
    %s216 = sphi 0, %s213
    %s217 = sphi 0, %s216
    %s233 = sphi 0, %s217
  $region4: #{_vq_forward.1} parent=0 // loop_header_branch
    %17 = sbr.rel (%p15) target = $region8
  $region5: #{_vq_forward.1} parent=0 // loop_body
    %s19 = ssub.s32 %s14, 1
    %s20 = ssub.s32 %s14, 2
    %s27 = sadd.s32 1, %s22
    %p28 = scmp.ge.s32.totalorder %s27, 1
    %s29 = scalar_select %p28, 0, %s27
    %s30 = sadd.s32 1, %s21
    %s31 = scalar_select %p28, %s30, %s21
    %p32 = scmp.ge.s32.totalorder %s31, 2
    %s33 = scalar_select %p32, 0, %s31
    %s34 = ssub.s32 %s21, %s33
    %s35 = ssub.s32 %s22, %s29
    %s36 = sor.u32 %s34, %s35
    %p37 = scmp.eq.s32.totalorder %s36, 0
    %s39 = sadd.s32 %s38, 1
    %s40 = scalar_select %p37, %s38, %s39
    %p43 = pneg %p37
    %p44 = scmp.eq.s32.totalorder %s14, 1
    %p45 = por %p43, %p44
    %p46 = scmp.ne.s32.totalorder %s38, %s41
    %p47 = scmp.eq.s32.totalorder %s14, 0
    %p48 = por %p46, %p47
    %p49 = scmp.ne.s32.totalorder %s38, %s41
    %p50 = scmp.eq.s32.totalorder %s19, 1
    %p51 = por %p49, %p50
    %p52 = scmp.ne.s32.totalorder %s41, %s42
    %p53 = scmp.eq.s32.totalorder %s19, 0
    %p54 = por %p52, %p53
    %p55 = scmp.ne.s32.totalorder %s41, %s42
    %p56 = scmp.eq.s32.totalorder %s20, 1
    %p57 = por %p55, %p56
    %p59 = scmp.ne.s32.totalorder %s42, %s58
    %p60 = scmp.eq.s32.totalorder %s20, 0
    %p61 = por %p59, %p60
    %s63 = sadd.s32 %s62, 1
    %p66 = scmp.eq.s32.totalorder %s14, 1
    %p67 = scmp.ne.s32.totalorder %s62, %s64
    %p68 = scmp.eq.s32.totalorder %s14, 0
    %p69 = por %p67, %p68
    %p70 = scmp.ne.s32.totalorder %s62, %s64
    %p71 = scmp.eq.s32.totalorder %s19, 1
    %p72 = por %p70, %p71
    %p73 = scmp.ne.s32.totalorder %s64, %s65
    %p74 = scmp.eq.s32.totalorder %s19, 0
    %p75 = por %p73, %p74
    %p76 = scmp.ne.s32.totalorder %s64, %s65
    %p77 = scmp.eq.s32.totalorder %s20, 1
    %p78 = por %p76, %p77
    %p80 = scmp.ne.s32.totalorder %s65, %s79
    %p81 = scmp.eq.s32.totalorder %s20, 0
    %p82 = por %p80, %p81
    %s84 = sadd.s32 %s83, 1
    %p87 = scmp.eq.s32.totalorder %s14, 1
    %p88 = scmp.ne.s32.totalorder %s83, %s85
    %p89 = scmp.eq.s32.totalorder %s14, 0
    %p90 = por %p88, %p89
    %p91 = scmp.ne.s32.totalorder %s83, %s85
    %p92 = scmp.eq.s32.totalorder %s19, 1
    %p93 = por %p91, %p92
    %p94 = scmp.ne.s32.totalorder %s85, %s86
    %p95 = scmp.eq.s32.totalorder %s19, 0
    %p96 = por %p94, %p95
    %p97 = scmp.ne.s32.totalorder %s85, %s86
    %p98 = scmp.eq.s32.totalorder %s20, 1
    %p99 = por %p97, %p98
    %p101 = scmp.ne.s32.totalorder %s86, %s100
    %p102 = scmp.eq.s32.totalorder %s20, 0
    %p103 = por %p101, %p102
    %s105 = sadd.s32 %s104, 1
    %p108 = scmp.eq.s32.totalorder %s14, 1
    %p109 = scmp.ne.s32.totalorder %s104, %s106
    %p110 = scmp.eq.s32.totalorder %s14, 0
    %p111 = por %p109, %p110
    %p112 = scmp.ne.s32.totalorder %s104, %s106
    %p113 = scmp.eq.s32.totalorder %s19, 1
    %p114 = por %p112, %p113
    %p115 = scmp.ne.s32.totalorder %s106, %s107
    %p116 = scmp.eq.s32.totalorder %s19, 0
    %p117 = por %p115, %p116
    %p118 = scmp.ne.s32.totalorder %s106, %s107
    %p119 = scmp.eq.s32.totalorder %s20, 1
    %p120 = por %p118, %p119
    %p122 = scmp.ne.s32.totalorder %s107, %s121
    %p123 = scmp.eq.s32.totalorder %s20, 0
    %p124 = por %p122, %p123
    %s125 = ssub.s32 %s21, %s33
    %s126 = ssub.s32 %s22, %s29
    %s127 = sor.u32 %s125, %s126
    %p128 = scmp.eq.s32.totalorder %s127, 0
    %s130 = sadd.s32 %s129, 1
    %s131 = scalar_select %p128, %s129, %s130
    %p134 = pneg %p128
    %p135 = scmp.eq.s32.totalorder %s14, 1
    %p136 = por %p134, %p135
    %p137 = scmp.ne.s32.totalorder %s129, %s132
    %p138 = scmp.eq.s32.totalorder %s14, 0
    %p139 = por %p137, %p138
    %p140 = scmp.ne.s32.totalorder %s129, %s132
    %p141 = scmp.eq.s32.totalorder %s19, 1
    %p142 = por %p140, %p141
    %p143 = scmp.ne.s32.totalorder %s132, %s133
    %p144 = scmp.eq.s32.totalorder %s19, 0
    %p145 = por %p143, %p144
    %p146 = scmp.ne.s32.totalorder %s132, %s133
    %p147 = scmp.eq.s32.totalorder %s20, 1
    %p148 = por %p146, %p147
    %p150 = scmp.ne.s32.totalorder %s133, %s149
    %p151 = scmp.eq.s32.totalorder %s20, 0
    %p152 = por %p150, %p151
    %s153 = ssub.s32 %s21, %s33
    %s154 = ssub.s32 %s22, %s29
    %s155 = sor.u32 %s153, %s154
    %p156 = scmp.eq.s32.totalorder %s155, 0
    %s158 = sadd.s32 %s157, 1
    %s159 = scalar_select %p156, %s157, %s158
    %p162 = pneg %p156
    %p163 = scmp.eq.s32.totalorder %s14, 1
    %p164 = por %p162, %p163
    %p165 = scmp.ne.s32.totalorder %s157, %s160
    %p166 = scmp.eq.s32.totalorder %s14, 0
    %p167 = por %p165, %p166
    %p168 = scmp.ne.s32.totalorder %s157, %s160
    %p169 = scmp.eq.s32.totalorder %s19, 1
    %p170 = por %p168, %p169
    %p171 = scmp.ne.s32.totalorder %s160, %s161
    %p172 = scmp.eq.s32.totalorder %s19, 0
    %p173 = por %p171, %p172
    %p174 = scmp.ne.s32.totalorder %s160, %s161
    %p175 = scmp.eq.s32.totalorder %s20, 1
    %p176 = por %p174, %p175
    %p178 = scmp.ne.s32.totalorder %s161, %s177
    %p179 = scmp.eq.s32.totalorder %s20, 0
    %p180 = por %p178, %p179
    %s181 = ssub.s32 %s21, %s33
    %s182 = ssub.s32 %s22, %s29
    %s183 = sor.u32 %s181, %s182
    %p184 = scmp.eq.s32.totalorder %s183, 0
    %s186 = sadd.s32 %s185, 1
    %s187 = scalar_select %p184, %s185, %s186
    %p190 = pneg %p184
    %p191 = scmp.eq.s32.totalorder %s14, 1
    %p192 = por %p190, %p191
    %p193 = scmp.ne.s32.totalorder %s185, %s188
    %p194 = scmp.eq.s32.totalorder %s14, 0
    %p195 = por %p193, %p194
    %p196 = scmp.ne.s32.totalorder %s185, %s188
    %p197 = scmp.eq.s32.totalorder %s19, 1
    %p198 = por %p196, %p197
    %p199 = scmp.ne.s32.totalorder %s188, %s189
    %p200 = scmp.eq.s32.totalorder %s19, 0
    %p201 = por %p199, %p200
    %p202 = scmp.ne.s32.totalorder %s188, %s189
    %p203 = scmp.eq.s32.totalorder %s20, 1
    %p204 = por %p202, %p203
    %p206 = scmp.ne.s32.totalorder %s189, %s205
    %p207 = scmp.eq.s32.totalorder %s20, 0
    %p208 = por %p206, %p207
    %s209 = ssub.s32 %s21, %s33
    %s210 = ssub.s32 %s22, %s29
    %s211 = sor.u32 %s209, %s210
    %p212 = scmp.eq.s32.totalorder %s211, 0
    %s214 = sadd.s32 %s213, 1
    %s215 = scalar_select %p212, %s213, %s214
    %p218 = pneg %p212
    %p219 = scmp.eq.s32.totalorder %s14, 1
    %p220 = por %p218, %p219
    %p221 = scmp.ne.s32.totalorder %s213, %s216
    %p222 = scmp.eq.s32.totalorder %s14, 0
    %p223 = por %p221, %p222
    %p224 = scmp.ne.s32.totalorder %s213, %s216
    %p225 = scmp.eq.s32.totalorder %s19, 1
    %p226 = por %p224, %p225
    %p227 = scmp.ne.s32.totalorder %s216, %s217
    %p228 = scmp.eq.s32.totalorder %s19, 0
    %p229 = por %p227, %p228
    %p230 = scmp.ne.s32.totalorder %s216, %s217
    %p231 = scmp.eq.s32.totalorder %s20, 1
    %p232 = por %p230, %p231
    %p234 = scmp.ne.s32.totalorder %s217, %s233
    %p235 = scmp.eq.s32.totalorder %s20, 0
    %p236 = por %p234, %p235
    %p237 = scmp.le.s32.totalorder 1, %s14
    %p238 = scmp.lt.s32.totalorder %s14, 3
    %p239 = pnand %p237, %p238
    %p240 = pneg %p239
    // Predicated region
    $region9: #{_vq_forward.1} parent=5 // pred_check
      _
    $region10: #{_vq_forward.1} parent=5 // pred_check_branch
      %242 = sbr.rel (%p239) target = $region12
    $region11: #{_vq_forward.1} parent=5 // pred_region
      %s243 = ssub.s32 %s14, 1
      // Predicated region
      $region13: #{_vq_forward.1} parent=11 // pred_check
        %p244 = pneg %p75
      $region14: #{_vq_forward.1} parent=11 // pred_check_branch
        %246 = sbr.rel (%p244) target = $region16
      $region15: #{_vq_forward.1} parent=11 // pred_region
        _
      $region16: #{_vq_forward.1} parent=11 // pred_fallthru
        _
      // Predicated region
      $region17: #{_vq_forward.1} parent=11 // pred_check
        %p247 = pneg %p96
      $region18: #{_vq_forward.1} parent=11 // pred_check_branch
        %249 = sbr.rel (%p247) target = $region20
      $region19: #{_vq_forward.1} parent=11 // pred_region
        _
      $region20: #{_vq_forward.1} parent=11 // pred_fallthru
        _
      // Predicated region
      $region21: #{_vq_forward.1} parent=11 // pred_check
        %p250 = pneg %p117
      $region22: #{_vq_forward.1} parent=11 // pred_check_branch
        %252 = sbr.rel (%p250) target = $region24
      $region23: #{_vq_forward.1} parent=11 // pred_region
        _
      $region24: #{_vq_forward.1} parent=11 // pred_fallthru
        _
    $region12: #{_vq_forward.1} parent=5 // pred_fallthru
      _
    %p253 = scmp.lt.s32.totalorder %s14, 2
    // Predicated region
    $region25: #{_vq_forward.1} parent=5 // pred_check
      %p254 = pneg %p253
    $region26: #{_vq_forward.1} parent=5 // pred_check_branch
      %256 = sbr.rel (%p254) target = $region28
    $region27: #{_vq_forward.1} parent=5 // pred_region
      // Predicated region
      $region29: #{_vq_forward.1} parent=27 // pred_check
        %p257 = pneg %p48
      $region30: #{_vq_forward.1} parent=27 // pred_check_branch
        %259 = sbr.rel (%p257) target = $region32
      $region31: #{_vq_forward.1} parent=27 // pred_region
        %p260 = scmp.lt.s32.totalorder %s21, 1
        %s261 = scalar_select %p260, %s21, 1
        %p262 = scmp.lt.s32.totalorder %s22, 0
        %s263 = scalar_select %p262, %s22, 0
        %s264 = smul.addr %s261, 4
        %s265 = sadd.s32 %s263, %s264
        %s266 = smul.addr %s265, 8
        %s267 = scalar_lea.vmem %s0, %s266
      $region32: #{_vq_forward.1} parent=27 // pred_fallthru
        _
    $region28: #{_vq_forward.1} parent=5 // pred_fallthru
      _
    %p268 = scmp.le.s32.totalorder 1, %s14
    %p269 = scmp.lt.s32.totalorder %s14, 3
    %p270 = pnand %p268, %p269
    %p271 = pneg %p270
    // Predicated region
    $region33: #{_vq_forward.1} parent=5 // pred_check
      _
    $region34: #{_vq_forward.1} parent=5 // pred_check_branch
      %273 = sbr.rel (%p270) target = $region36
    $region35: #{_vq_forward.1} parent=5 // pred_region
      %s274 = ssub.s32 %s14, 1
      %p275 = scmp.lt.s32.totalorder %s23, 1
      %s276 = scalar_select %p275, %s23, 1
      %p277 = scmp.lt.s32.totalorder %s24, 0
      %s278 = scalar_select %p277, %s24, 0
      %s279 = smul.addr %s276, 4
      %s280 = sadd.s32 %s278, %s279
      %s281 = smul.addr %s280, 8
      %s282 = scalar_lea.vmem %s0, %s281
      %p283 = pneg %p54
      %p284 = pneg %p51
      %p285 = pneg %p75
      %p286 = pneg %p72
      %p287 = pneg %p96
      %p288 = pneg %p93
      %p289 = pneg %p117
      %p290 = pneg %p114
      %p291 = pneg %p145
      %p292 = pneg %p142
      %p293 = scmp.lt.s32.totalorder %s23, 1
      %s294 = scalar_select %p293, %s23, 1
      %p295 = scmp.lt.s32.totalorder %s24, 0
      %s296 = scalar_select %p295, %s24, 0
      %s297 = smul.addr %s294, 4
      %s298 = sadd.s32 %s296, %s297
      %s299 = smul.addr %s298, 8
      %s300 = scalar_lea.vmem %s4, %s299
      %p301 = pneg %p173
      %p302 = pneg %p170
      %p303 = scmp.lt.s32.totalorder %s23, 1
      %s304 = scalar_select %p303, %s23, 1
      %p305 = scmp.lt.s32.totalorder %s24, 0
      %s306 = scalar_select %p305, %s24, 0
      %s307 = sadd.s32 %s306, %s304
      %s308 = scalar_lea.vmem %s5, %s307
      %p309 = pneg %p201
      %p310 = pneg %p198
      %p311 = scmp.lt.s32.totalorder %s23, 1
      %s312 = scalar_select %p311, %s23, 1
      %p313 = scmp.lt.s32.totalorder %s24, 0
      %s314 = scalar_select %p313, %s24, 0
      %s315 = sadd.s32 %s314, %s312
      %s316 = scalar_lea.vmem %s6, %s315
      %p317 = pneg %p229
      %p318 = pneg %p226
      %p319 = scmp.lt.s32.totalorder %s23, 1
      %s320 = scalar_select %p319, %s23, 1
      %p321 = scmp.lt.s32.totalorder %s24, 0
      %s322 = scalar_select %p321, %s24, 0
      %s323 = smul.addr %s322, 8
      %s324 = smul.addr %s320, 8
      %s325 = sadd.s32 %s323, %s324
      %s326 = smul.addr %s325, 8
      %s327 = scalar_lea.vmem %s7, %s326
      %p328 = scmp.lt.s32.totalorder %s23, 1
      %s329 = scalar_select %p328, %s23, 1
      %p330 = scmp.lt.s32.totalorder %s24, 0
      %s331 = scalar_select %p330, %s24, 0
      %s332 = smul.addr %s329, 4
      %s333 = sadd.s32 %s331, %s332
      %s334 = smul.addr %s333, 8
      %s335 = scalar_lea.vmem %s0, %s334
      %p336 = scmp.lt.s32.totalorder %s23, 1
      %s337 = scalar_select %p336, %s23, 1
      %p338 = scmp.lt.s32.totalorder %s24, 0
      %s339 = scalar_select %p338, %s24, 0
      %s340 = smul.addr %s337, 4
      %s341 = sadd.s32 %s339, %s340
      %s342 = smul.addr %s341, 8
      %s343 = scalar_lea.vmem %s4, %s342
      %p344 = scmp.lt.s32.totalorder %s23, 1
      %s345 = scalar_select %p344, %s23, 1
      %p346 = scmp.lt.s32.totalorder %s24, 0
      %s347 = scalar_select %p346, %s24, 0
      %s348 = sadd.s32 %s347, %s345
      %s349 = scalar_lea.vmem %s5, %s348
      %p350 = scmp.lt.s32.totalorder %s23, 1
      %s351 = scalar_select %p350, %s23, 1
      %p352 = scmp.lt.s32.totalorder %s24, 0
      %s353 = scalar_select %p352, %s24, 0
      %s354 = sadd.s32 %s353, %s351
      %s355 = scalar_lea.vmem %s6, %s354
      %p356 = scmp.lt.s32.totalorder %s23, 1
      %s357 = scalar_select %p356, %s23, 1
      %p358 = scmp.lt.s32.totalorder %s24, 0
      %s359 = scalar_select %p358, %s24, 0
      %s360 = smul.addr %s359, 8
      %s361 = smul.addr %s357, 8
      %s362 = sadd.s32 %s360, %s361
      %s363 = smul.addr %s362, 8
      %s364 = scalar_lea.vmem %s7, %s363
      %v365 = vld [vmem:[%s335] sm:$0xff]
      %v366 = vld [vmem:[%s335 + $0x8] sm:$0xff]
      %v367 = vld [vmem:[%s335 + $0x10] sm:$0xff]
      %v368 = vld [vmem:[%s335 + $0x18] sm:$0xff]
      %v369 = vld [vmem:[%s1] sm:$0xff]
      %v370 = vld [vmem:[%s1 + $0x8] sm:$0xff]
      %v371 = vld [vmem:[%s1 + $0x10] sm:$0xff]
      %v372 = vld [vmem:[%s1 + $0x18] sm:$0xff]
      %v373 = vld [vmem:[%s1 + $0x20] sm:$0xff]
      %v374 = vld [vmem:[%s1 + $0x28] sm:$0xff]
      %v375 = vld [vmem:[%s1 + $0x30] sm:$0xff]
      %v376 = vld [vmem:[%s1 + $0x38] sm:$0xff]
      %v377 = vld [vmem:[%s2] sm:$0xff]
      %v378 = vld [vmem:[%s2 + $0x8] sm:$0xff]
      %v379 = vld [vmem:[%s2 + $0x10] sm:$0xff]
      %v380 = vld [vmem:[%s2 + $0x18] sm:$0xff]
      %v381 = vld [vmem:[%s3] sm:$0xff]
      %v382 = vld [vmem:[%s3 + $0x8] sm:$0xff]
      %v383 = vld [vmem:[%s3 + $0x10] sm:$0xff]
      %v384 = vld [vmem:[%s3 + $0x18] sm:$0xff]
      %v385 = vld [vmem:[%s3 + $0x20] sm:$0xff]
      %v386 = vld [vmem:[%s3 + $0x28] sm:$0xff]
      %v387 = vld [vmem:[%s3 + $0x30] sm:$0xff]
      %v388 = vld [vmem:[%s3 + $0x38] sm:$0xff]
      %390 = vset.pattern.permute.xlu0 0
      %391 = vperm.xlu0 %390, %v381
      %v392 = vpop.permute.xlu0 %391
      %395 = vset.pattern.permute.xlu0 0
      %396 = vperm.xlu0 %395, %v382
      %v397 = vpop.permute.xlu0 %396
      %400 = vset.pattern.permute.xlu0 0
      %401 = vperm.xlu0 %400, %v383
      %v402 = vpop.permute.xlu0 %401
      %405 = vset.pattern.permute.xlu0 0
      %406 = vperm.xlu0 %405, %v384
      %v407 = vpop.permute.xlu0 %406
      %410 = vset.pattern.permute.xlu0 0
      %411 = vperm.xlu0 %410, %v385
      %v412 = vpop.permute.xlu0 %411
      %415 = vset.pattern.permute.xlu0 0
      %416 = vperm.xlu0 %415, %v386
      %v417 = vpop.permute.xlu0 %416
      %420 = vset.pattern.permute.xlu0 0
      %421 = vperm.xlu0 %420, %v387
      %v422 = vpop.permute.xlu0 %421
      %425 = vset.pattern.permute.xlu0 0
      %426 = vperm.xlu0 %425, %v388
      %v427 = vpop.permute.xlu0 %426
      %vm429 = vcmask 261120
      %v431 = vsel %vm429, %v369, 0
      %v434 = vsel %vm429, %v370, 0
      %v437 = vsel %vm429, %v371, 0
      %v440 = vsel %vm429, %v372, 0
      %v443 = vsel %vm429, %v373, 0
      %v446 = vsel %vm429, %v374, 0
      %v449 = vsel %vm429, %v375, 0
      %v452 = vsel %vm429, %v376, 0
      %454 = vmatprep.subr.mxu0 0.0
      %455 = vmatpush1.msra.mxu0 0.0
      %456 = vmatprep.subr.mxu0 0.0
      %457 = vmatpush1.msra.mxu0 0.0
      %458 = vmatprep.subr.mxu0 0.0
      %459 = vmatpush1.msra.mxu0 0.0
      %460 = vmatprep.subr.mxu0 0.0
      %461 = vmatpush1.msra.mxu0 0.0
      %462 = vmatprep.subr.mxu0 0.0
      %463 = vmatpush1.msra.mxu0 0.0
      %464 = vmatprep.subr.mxu0 0.0
      %465 = vmatpush1.msra.mxu0 0.0
      %466 = vmatprep.subr.mxu0 0.0
      %467 = vmatpush1.msra.mxu0 0.0
      %468 = vmatprep.subr.mxu0 0.0
      %469 = vmatpush1.msra.mxu0 0.0
      %470 = vmatprep.subr.mxu0 0.0
      %471 = vmatpush1.msra.mxu0 0.0
      %472 = vmatprep.subr.mxu0 0.0
      %473 = vmatpush1.msra.mxu0 0.0
      %474 = vmatprep.subr.mxu0 0.0
      %475 = vmatpush1.msra.mxu0 0.0
      %476 = vmatprep.subr.mxu0 0.0
      %477 = vmatpush1.msra.mxu0 0.0
      %478 = vmatprep.subr.mxu0 0.0
      %479 = vmatpush1.msra.mxu0 %v368
      %480 = vmatprep.subr.mxu0 0.0
      %481 = vmatpush1.msra.mxu0 %v367
      %482 = vmatprep.subr.mxu0 0.0
      %483 = vmatpush1.msra.mxu0 %v366
      %484 = vmatprep.subr.mxu0 0.0
      %485 = vmatpush1.msra.mxu0 %v365
      %486 = vmatprep.subr.mxu0 0.0
      %487 = vmatpush2.msra.mxu0 0.0
      %488 = vmatprep.subr.mxu0 0.0
      %489 = vmatpush2.msra.mxu0 0.0
      %490 = vmatprep.subr.mxu0 0.0
      %491 = vmatpush2.msra.mxu0 0.0
      %492 = vmatprep.subr.mxu0 0.0
      %493 = vmatpush2.msra.mxu0 0.0
      %494 = vmatprep.subr.mxu0 0.0
      %495 = vmatpush2.msra.mxu0 0.0
      %496 = vmatprep.subr.mxu0 0.0
      %497 = vmatpush2.msra.mxu0 0.0
      %498 = vmatprep.subr.mxu0 0.0
      %499 = vmatpush2.msra.mxu0 0.0
      %500 = vmatprep.subr.mxu0 0.0
      %501 = vmatpush2.msra.mxu0 0.0
      %502 = vmatprep.subr.mxu0 0.0
      %503 = vmatpush2.msra.mxu0 0.0
      %504 = vmatprep.subr.mxu0 0.0
      %505 = vmatpush2.msra.mxu0 0.0
      %506 = vmatprep.subr.mxu0 0.0
      %507 = vmatpush2.msra.mxu0 0.0
      %508 = vmatprep.subr.mxu0 0.0
      %509 = vmatpush2.msra.mxu0 0.0
      %510 = vmatprep.subr.mxu0 0.0
      %511 = vmatpush2.msra.mxu0 0.0
      %512 = vmatprep.subr.mxu0 0.0
      %513 = vmatpush2.msra.mxu0 0.0
      %514 = vmatprep.subr.mxu0 0.0
      %515 = vmatpush2.msra.mxu0 0.0
      %516 = vmatprep.subr.mxu0 0.0
      %517 = vmatpush2.msra.mxu0 0.0
      %518 = vmatprep.mubr.f32.mxu0 0.0
      %519 = vmatmul.mubr.f32.gmra.mxu0 %v431
      %v520 = vpop.f32.mrf.mxu0
      %v521 = vadd.f32 %v392, %v520
      %v522 = vpop.f32.mrf.mxu0
      %523 = vmatprep.mubr.f32.mxu0 0.0
      %524 = vmatmul.mubr.f32.gmra.mxu0 %v434
      %v525 = vpop.f32.mrf.mxu0
      %v526 = vadd.f32 %v397, %v525
      %v527 = vpop.f32.mrf.mxu0
      %528 = vmatprep.mubr.f32.mxu0 0.0
      %529 = vmatmul.mubr.f32.gmra.mxu0 %v437
      %v530 = vpop.f32.mrf.mxu0
      %v531 = vadd.f32 %v402, %v530
      %v532 = vpop.f32.mrf.mxu0
      %533 = vmatprep.mubr.f32.mxu0 0.0
      %534 = vmatmul.mubr.f32.gmra.mxu0 %v440
      %v535 = vpop.f32.mrf.mxu0
      %v536 = vadd.f32 %v407, %v535
      %v537 = vpop.f32.mrf.mxu0
      %538 = vmatprep.mubr.f32.mxu0 0.0
      %539 = vmatmul.mubr.f32.gmra.mxu0 %v443
      %v540 = vpop.f32.mrf.mxu0
      %v541 = vadd.f32 %v412, %v540
      %v542 = vpop.f32.mrf.mxu0
      %543 = vmatprep.mubr.f32.mxu0 0.0
      %544 = vmatmul.mubr.f32.gmra.mxu0 %v446
      %v545 = vpop.f32.mrf.mxu0
      %v546 = vadd.f32 %v417, %v545
      %v547 = vpop.f32.mrf.mxu0
      %548 = vmatprep.mubr.f32.mxu0 0.0
      %549 = vmatmul.mubr.f32.gmra.mxu0 %v449
      %v550 = vpop.f32.mrf.mxu0
      %v551 = vadd.f32 %v422, %v550
      %v552 = vpop.f32.mrf.mxu0
      %553 = vmatprep.mubr.f32.mxu0 0.0
      %554 = vmatmul.mubr.f32.gmra.mxu0 %v452
      %v555 = vpop.f32.mrf.mxu0
      %v556 = vadd.f32 %v427, %v555
      %v557 = vpop.f32.mrf.mxu0
      %558 = vdwg.mxu0
      %v559 = vlaneseq
      %v560 = vshrl.u32 %v559, 7
      %v561 = vadd.s32 %v560, 8
      %v562 = vadd.s32 %v560, 16
      %v563 = vadd.s32 %v560, 24
      %v564 = vadd.s32 %v560, 32
      %v565 = vadd.s32 %v560, 40
      %v566 = vadd.s32 %v560, 48
      %v567 = vadd.s32 %v560, 56
      %v568 = vmax.f32 %v521, %v541
      %v569 = vmax.f32 %v526, %v546
      %v570 = vmax.f32 %v531, %v551
      %v571 = vmax.f32 %v536, %v556
      %v572 = vmax.f32 %v568, %v569
      %v573 = vmax.f32 %v570, %v571
      %v574 = vmax.f32 %v572, %v573
      %v575 = vrot.slane %v574, 4
      %v576 = vmax.f32 %v574, %v575
      %v577 = vrot.slane %v576, 2
      %v578 = vmax.f32 %v576, %v577
      %v579 = vrot.slane %v578, 1
      %v580 = vmax.f32 %v578, %v579
      %vm581 = vcmp.eq.f32.partialorder %v521, %v580
      %vm582 = vcmp.eq.f32.partialorder %v526, %v580
      %vm583 = vcmp.eq.f32.partialorder %v531, %v580
      %vm584 = vcmp.eq.f32.partialorder %v536, %v580
      %vm585 = vcmp.eq.f32.partialorder %v541, %v580
      %vm586 = vcmp.eq.f32.partialorder %v546, %v580
      %vm587 = vcmp.eq.f32.partialorder %v551, %v580
      %vm588 = vcmp.eq.f32.partialorder %v556, %v580
      %v589 = vsel %vm581, %v560, 64
      %v590 = vsel %vm582, %v561, 64
      %v591 = vsel %vm583, %v562, 64
      %v592 = vsel %vm584, %v563, 64
      %v593 = vsel %vm585, %v564, 64
      %v594 = vsel %vm586, %v565, 64
      %v595 = vsel %vm587, %v566, 64
      %v596 = vsel %vm588, %v567, 64
      %vm597 = vcmp.lt.s32.totalorder %v589, %v593
      %v598 = vsel %vm597, %v589, %v593
      %vm599 = vcmp.lt.s32.totalorder %v590, %v594
      %v600 = vsel %vm599, %v590, %v594
      %vm601 = vcmp.lt.s32.totalorder %v591, %v595
      %v602 = vsel %vm601, %v591, %v595
      %vm603 = vcmp.lt.s32.totalorder %v592, %v596
      %v604 = vsel %vm603, %v592, %v596
      %vm605 = vcmp.lt.s32.totalorder %v598, %v600
      %v606 = vsel %vm605, %v598, %v600
      %vm607 = vcmp.lt.s32.totalorder %v602, %v604
      %v608 = vsel %vm607, %v602, %v604
      %vm609 = vcmp.lt.s32.totalorder %v606, %v608
      %v610 = vsel %vm609, %v606, %v608
      %v611 = vrot.slane %v610, 4
      %vm612 = vcmp.lt.s32.totalorder %v610, %v611
      %v613 = vsel %vm612, %v610, %v611
      %v614 = vrot.slane %v613, 2
      %vm615 = vcmp.lt.s32.totalorder %v613, %v614
      %v616 = vsel %vm615, %v613, %v614
      %v617 = vrot.slane %v616, 1
      %vm618 = vcmp.lt.s32.totalorder %v616, %v617
      %v619 = vsel %vm618, %v616, %v617
      %vm620 = vcmp.eq.s32.totalorder %v560, %v619
      %vm621 = vcmp.eq.s32.totalorder %v561, %v619
      %vm622 = vcmp.eq.s32.totalorder %v562, %v619
      %vm623 = vcmp.eq.s32.totalorder %v563, %v619
      %vm624 = vcmp.eq.s32.totalorder %v564, %v619
      %vm625 = vcmp.eq.s32.totalorder %v565, %v619
      %vm626 = vcmp.eq.s32.totalorder %v566, %v619
      %vm627 = vcmp.eq.s32.totalorder %v567, %v619
      %v628 = vsel %vm620, 1, 0
      %v629 = vsel %vm621, 1, 0
      %v630 = vsel %vm622, 1, 0
      %v631 = vsel %vm623, 1, 0
      %v632 = vsel %vm624, 1, 0
      %v633 = vsel %vm625, 1, 0
      %v634 = vsel %vm626, 1, 0
      %v635 = vsel %vm627, 1, 0
      %v636 = vcvt.s32.f32 %v628
      %v637 = vcvt.s32.f32 %v629
      %v638 = vcvt.s32.f32 %v630
      %v639 = vcvt.s32.f32 %v631
      %v640 = vcvt.s32.f32 %v632
      %v641 = vcvt.s32.f32 %v633
      %v642 = vcvt.s32.f32 %v634
      %v643 = vcvt.s32.f32 %v635
      %vm644 = vcmask 523264
      %v646 = vsel %vm644, %v377, 0
      %v649 = vsel %vm644, %v378, 0
      %v652 = vsel %vm644, %v379, 0
      %v655 = vsel %vm644, %v380, 0
      %657 = vmatprep.subr.mxu0 0.0
      %658 = vmatpush1.msra.mxu0 0.0
      %659 = vmatprep.subr.mxu0 0.0
      %660 = vmatpush1.msra.mxu0 0.0
      %661 = vmatprep.subr.mxu0 0.0
      %662 = vmatpush1.msra.mxu0 0.0
      %663 = vmatprep.subr.mxu0 0.0
      %664 = vmatpush1.msra.mxu0 0.0
      %665 = vmatprep.subr.mxu0 0.0
      %666 = vmatpush1.msra.mxu0 0.0
      %667 = vmatprep.subr.mxu0 0.0
      %668 = vmatpush1.msra.mxu0 0.0
      %669 = vmatprep.subr.mxu0 0.0
      %670 = vmatpush1.msra.mxu0 0.0
      %671 = vmatprep.subr.mxu0 0.0
      %672 = vmatpush1.msra.mxu0 0.0
      %673 = vmatprep.subr.mxu0 0.0
      %674 = vmatpush1.msra.mxu0 %v643
      %675 = vmatprep.subr.mxu0 0.0
      %676 = vmatpush1.msra.mxu0 %v642
      %677 = vmatprep.subr.mxu0 0.0
      %678 = vmatpush1.msra.mxu0 %v641
      %679 = vmatprep.subr.mxu0 0.0
      %680 = vmatpush1.msra.mxu0 %v640
      %681 = vmatprep.subr.mxu0 0.0
      %682 = vmatpush1.msra.mxu0 %v639
      %683 = vmatprep.subr.mxu0 0.0
      %684 = vmatpush1.msra.mxu0 %v638
      %685 = vmatprep.subr.mxu0 0.0
      %686 = vmatpush1.msra.mxu0 %v637
      %687 = vmatprep.subr.mxu0 0.0
      %688 = vmatpush1.msra.mxu0 %v636
      %689 = vmatprep.subr.mxu0 0.0
      %690 = vmatpush2.msra.mxu0 0.0
      %691 = vmatprep.subr.mxu0 0.0
      %692 = vmatpush2.msra.mxu0 0.0
      %693 = vmatprep.subr.mxu0 0.0
      %694 = vmatpush2.msra.mxu0 0.0
      %695 = vmatprep.subr.mxu0 0.0
      %696 = vmatpush2.msra.mxu0 0.0
      %697 = vmatprep.subr.mxu0 0.0
      %698 = vmatpush2.msra.mxu0 0.0
      %699 = vmatprep.subr.mxu0 0.0
      %700 = vmatpush2.msra.mxu0 0.0
      %701 = vmatprep.subr.mxu0 0.0
      %702 = vmatpush2.msra.mxu0 0.0
      %703 = vmatprep.subr.mxu0 0.0
      %704 = vmatpush2.msra.mxu0 0.0
      %705 = vmatprep.subr.mxu0 0.0
      %706 = vmatpush2.msra.mxu0 0.0
      %707 = vmatprep.subr.mxu0 0.0
      %708 = vmatpush2.msra.mxu0 0.0
      %709 = vmatprep.subr.mxu0 0.0
      %710 = vmatpush2.msra.mxu0 0.0
      %711 = vmatprep.subr.mxu0 0.0
      %712 = vmatpush2.msra.mxu0 0.0
      %713 = vmatprep.subr.mxu0 0.0
      %714 = vmatpush2.msra.mxu0 0.0
      %715 = vmatprep.subr.mxu0 0.0
      %716 = vmatpush2.msra.mxu0 0.0
      %717 = vmatprep.subr.mxu0 0.0
      %718 = vmatpush2.msra.mxu0 0.0
      %719 = vmatprep.subr.mxu0 0.0
      %720 = vmatpush2.msra.mxu0 0.0
      %721 = vmatprep.mubr.f32.mxu0 0.0
      %722 = vmatmul.mubr.f32.gmra.mxu0 %v646
      %v723 = vpop.f32.mrf.mxu0
      %v724 = vadd.f32 0.0, %v723
      %v725 = vpop.f32.mrf.mxu0
      %726 = vmatprep.mubr.f32.mxu0 0.0
      %727 = vmatmul.mubr.f32.gmra.mxu0 %v649
      %v728 = vpop.f32.mrf.mxu0
      %v729 = vadd.f32 0.0, %v728
      %v730 = vpop.f32.mrf.mxu0
      %731 = vmatprep.mubr.f32.mxu0 0.0
      %732 = vmatmul.mubr.f32.gmra.mxu0 %v652
      %v733 = vpop.f32.mrf.mxu0
      %v734 = vadd.f32 0.0, %v733
      %v735 = vpop.f32.mrf.mxu0
      %736 = vmatprep.mubr.f32.mxu0 0.0
      %737 = vmatmul.mubr.f32.gmra.mxu0 %v655
      %v738 = vpop.f32.mrf.mxu0
      %v739 = vadd.f32 0.0, %v738
      %v740 = vpop.f32.mrf.mxu0
      %741 = vdwg.mxu0
      %742 = vst [vmem:[%s343] sm:$0xff] %v724
      %743 = vst [vmem:[%s343 + $0x8] sm:$0xff] %v729
      %744 = vst [vmem:[%s343 + $0x10] sm:$0xff] %v734
      %745 = vst [vmem:[%s343 + $0x18] sm:$0xff] %v739
      %746 = vst [vmem:[%s349] sm:$0x1] %v619
      %s747 = smul.u32 %s24, 128
      %v748 = vlaneseq
      %v749 = vand.u32 %v748, 127
      %v750 = vstv %s747
      %v751 = vadd.s32 %v750, %v749
      %vm752 = vcmp.lt.s32.totalorder %v751, 8
      %v753 = vsub.f32 %v724, %v365
      %v754 = vsub.f32 %v729, %v366
      %v755 = vsub.f32 %v734, %v367
      %v756 = vsub.f32 %v739, %v368
      %v757 = vmul.f32 %v753, %v753
      %v758 = vmul.f32 %v754, %v754
      %v759 = vmul.f32 %v755, %v755
      %v760 = vmul.f32 %v756, %v756
      %v761 = vadd.f32 %v757, %v758
      %v762 = vadd.f32 %v761, %v759
      %v763 = vadd.f32 %v762, %v760
      %v764 = vrot.slane %v763, 4
      %v765 = vadd.f32 %v763, %v764
      %v766 = vrot.slane %v765, 2
      %v767 = vadd.f32 %v765, %v766
      %v768 = vrot.slane %v767, 1
      %v769 = vadd.f32 %v767, %v768
      %v770 = vsel %vm752, %v769, 0.0
      %771 = vst [vmem:[%s355] sm:$0x1] %v770
      %v772 = vsel %vm752, 1, 0
      %vm773 = vcmp.eq.s32.totalorder %v772, 1
      %v774 = vsel %vm773, %v636, 0.0
      %v775 = vsel %vm773, %v637, 0.0
      %v776 = vsel %vm773, %v638, 0.0
      %v777 = vsel %vm773, %v639, 0.0
      %v778 = vsel %vm773, %v640, 0.0
      %v779 = vsel %vm773, %v641, 0.0
      %v780 = vsel %vm773, %v642, 0.0
      %v781 = vsel %vm773, %v643, 0.0
      %782 = vadd.xlane.f32.xlu0 %v774
      %v783 = vpop.xlane.xlu0 %782
      %784 = vadd.xlane.f32.xlu0 %v775
      %v785 = vpop.xlane.xlu0 %784
      %786 = vadd.xlane.f32.xlu0 %v776
      %v787 = vpop.xlane.xlu0 %786
      %788 = vadd.xlane.f32.xlu0 %v777
      %v789 = vpop.xlane.xlu0 %788
      %790 = vadd.xlane.f32.xlu0 %v778
      %v791 = vpop.xlane.xlu0 %790
      %792 = vadd.xlane.f32.xlu0 %v779
      %v793 = vpop.xlane.xlu0 %792
      %794 = vadd.xlane.f32.xlu0 %v780
      %v795 = vpop.xlane.xlu0 %794
      %796 = vadd.xlane.f32.xlu0 %v781
      %v797 = vpop.xlane.xlu0 %796
      %vm798 = vcmask 7168
      %799 = vst.msk [vmem:[%s364] sm:$0xff] %vm798, %v783
      %800 = vst.msk [vmem:[%s364 + $0x8] sm:$0xff] %vm798, %v785
      %801 = vst.msk [vmem:[%s364 + $0x10] sm:$0xff] %vm798, %v787
      %802 = vst.msk [vmem:[%s364 + $0x18] sm:$0xff] %vm798, %v789
      %803 = vst.msk [vmem:[%s364 + $0x20] sm:$0xff] %vm798, %v791
      %804 = vst.msk [vmem:[%s364 + $0x28] sm:$0xff] %vm798, %v793
      %805 = vst.msk [vmem:[%s364 + $0x30] sm:$0xff] %vm798, %v795
      %806 = vst.msk [vmem:[%s364 + $0x38] sm:$0xff] %vm798, %v797
      %p807 = scmp.lt.s32.totalorder %s23, 1
      %s808 = scalar_select %p807, %s23, 1
      %p809 = scmp.lt.s32.totalorder %s24, 0
      %s810 = scalar_select %p809, %s24, 0
      %s811 = smul.addr %s808, 4
      %s812 = sadd.s32 %s810, %s811
      %s813 = smul.addr %s812, 8
      %s814 = scalar_lea.vmem %s4, %s813
      %p815 = scmp.lt.s32.totalorder %s23, 1
      %s816 = scalar_select %p815, %s23, 1
      %p817 = scmp.lt.s32.totalorder %s24, 0
      %s818 = scalar_select %p817, %s24, 0
      %s819 = sadd.s32 %s818, %s816
      %s820 = scalar_lea.vmem %s5, %s819
      %p821 = scmp.lt.s32.totalorder %s23, 1
      %s822 = scalar_select %p821, %s23, 1
      %p823 = scmp.lt.s32.totalorder %s24, 0
      %s824 = scalar_select %p823, %s24, 0
      %s825 = sadd.s32 %s824, %s822
      %s826 = scalar_lea.vmem %s6, %s825
      %p827 = scmp.lt.s32.totalorder %s23, 1
      %s828 = scalar_select %p827, %s23, 1
      %p829 = scmp.lt.s32.totalorder %s24, 0
      %s830 = scalar_select %p829, %s24, 0
      %s831 = smul.addr %s830, 8
      %s832 = smul.addr %s828, 8
      %s833 = sadd.s32 %s831, %s832
      %s834 = smul.addr %s833, 8
      %s835 = scalar_lea.vmem %s7, %s834
      // Predicated region
      $region37: #{_vq_forward.1} parent=35 // pred_check
        %p836 = pneg %p142
      $region38: #{_vq_forward.1} parent=35 // pred_check_branch
        %838 = sbr.rel (%p836) target = $region40
      $region39: #{_vq_forward.1} parent=35 // pred_region
        _
      $region40: #{_vq_forward.1} parent=35 // pred_fallthru
        _
      // Predicated region
      $region41: #{_vq_forward.1} parent=35 // pred_check
        %p839 = pneg %p170
      $region42: #{_vq_forward.1} parent=35 // pred_check_branch
        %841 = sbr.rel (%p839) target = $region44
      $region43: #{_vq_forward.1} parent=35 // pred_region
        _
      $region44: #{_vq_forward.1} parent=35 // pred_fallthru
        _
      // Predicated region
      $region45: #{_vq_forward.1} parent=35 // pred_check
        %p842 = pneg %p198
      $region46: #{_vq_forward.1} parent=35 // pred_check_branch
        %844 = sbr.rel (%p842) target = $region48
      $region47: #{_vq_forward.1} parent=35 // pred_region
        _
      $region48: #{_vq_forward.1} parent=35 // pred_fallthru
        _
      // Predicated region
      $region49: #{_vq_forward.1} parent=35 // pred_check
        %p845 = pneg %p226
      $region50: #{_vq_forward.1} parent=35 // pred_check_branch
        %847 = sbr.rel (%p845) target = $region52
      $region51: #{_vq_forward.1} parent=35 // pred_region
        _
      $region52: #{_vq_forward.1} parent=35 // pred_fallthru
        _
    $region36: #{_vq_forward.1} parent=5 // pred_fallthru
      _
    %p848 = scmp.le.s32.totalorder 2, %s14
    // Predicated region
    $region53: #{_vq_forward.1} parent=5 // pred_check
      %p849 = pneg %p848
    $region54: #{_vq_forward.1} parent=5 // pred_check_branch
      %851 = sbr.rel (%p849) target = $region56
    $region55: #{_vq_forward.1} parent=5 // pred_region
      %s852 = ssub.s32 %s14, 2
      // Predicated region
      $region57: #{_vq_forward.1} parent=55 // pred_check
        %p853 = pneg %p148
      $region58: #{_vq_forward.1} parent=55 // pred_check_branch
        %855 = sbr.rel (%p853) target = $region60
      $region59: #{_vq_forward.1} parent=55 // pred_region
        %p856 = scmp.lt.s32.totalorder %s25, 1
        %s857 = scalar_select %p856, %s25, 1
        %p858 = scmp.lt.s32.totalorder %s26, 0
        %s859 = scalar_select %p858, %s26, 0
        %s860 = smul.addr %s857, 4
        %s861 = sadd.s32 %s859, %s860
        %s862 = smul.addr %s861, 8
        %s863 = scalar_lea.vmem %s4, %s862
      $region60: #{_vq_forward.1} parent=55 // pred_fallthru
        _
      // Predicated region
      $region61: #{_vq_forward.1} parent=55 // pred_check
        %p864 = pneg %p176
      $region62: #{_vq_forward.1} parent=55 // pred_check_branch
        %866 = sbr.rel (%p864) target = $region64
      $region63: #{_vq_forward.1} parent=55 // pred_region
        %p867 = scmp.lt.s32.totalorder %s25, 1
        %s868 = scalar_select %p867, %s25, 1
        %p869 = scmp.lt.s32.totalorder %s26, 0
        %s870 = scalar_select %p869, %s26, 0
        %s871 = sadd.s32 %s870, %s868
        %s872 = scalar_lea.vmem %s5, %s871
      $region64: #{_vq_forward.1} parent=55 // pred_fallthru
        _
      // Predicated region
      $region65: #{_vq_forward.1} parent=55 // pred_check
        %p873 = pneg %p204
      $region66: #{_vq_forward.1} parent=55 // pred_check_branch
        %875 = sbr.rel (%p873) target = $region68
      $region67: #{_vq_forward.1} parent=55 // pred_region
        %p876 = scmp.lt.s32.totalorder %s25, 1
        %s877 = scalar_select %p876, %s25, 1
        %p878 = scmp.lt.s32.totalorder %s26, 0
        %s879 = scalar_select %p878, %s26, 0
        %s880 = sadd.s32 %s879, %s877
        %s881 = scalar_lea.vmem %s6, %s880
      $region68: #{_vq_forward.1} parent=55 // pred_fallthru
        _
      // Predicated region
      $region69: #{_vq_forward.1} parent=55 // pred_check
        %p882 = pneg %p232
      $region70: #{_vq_forward.1} parent=55 // pred_check_branch
        %884 = sbr.rel (%p882) target = $region72
      $region71: #{_vq_forward.1} parent=55 // pred_region
        %p885 = scmp.lt.s32.totalorder %s25, 1
        %s886 = scalar_select %p885, %s25, 1
        %p887 = scmp.lt.s32.totalorder %s26, 0
        %s888 = scalar_select %p887, %s26, 0
        %s889 = smul.addr %s888, 8
        %s890 = smul.addr %s886, 8
        %s891 = sadd.s32 %s889, %s890
        %s892 = smul.addr %s891, 8
        %s893 = scalar_lea.vmem %s7, %s892
      $region72: #{_vq_forward.1} parent=55 // pred_fallthru
        _
    $region56: #{_vq_forward.1} parent=5 // pred_fallthru
      _
  $region6: #{_vq_forward.1} parent=0 // loop_footer
    %s18 = sadd.s32 1, %s14
  $region7: #{_vq_forward.1} parent=0 // loop_footer_branch
    %13 = sbr.rel target = $region3
  $region8: #{_vq_forward.1} parent=0 // loop_exit
    _

</llo_original>
